<compile_context>
chip_gen: v7x
topology: tpu7x:2x2x1
jax: 0.10.0
libtpu: 0.0.40
codegen_flags: <defaults>
</compile_context>

<pallas_src>
import functools

import jax
import jax.numpy as jnp
from jax.experimental import pallas as pl
from jax.experimental.pallas import tpu as pltpu


Z_DIM = 32
H1 = 128
H2 = 256
OUT = 28 * 28          # 784 (true output width)
OUT_PAD = 896          # 7 * 128, lane-dense padded width


def _round_up(x, m):
    return ((x + m - 1) // m) * m


def _decoder_mlp_kernel(x_ref, w1_ref, b1_ref, w2_ref, b2_ref, w3_ref, b3_ref,
                        o_ref, h1_ref, h2_ref):
    """3-layer MLP for one batch tile. bf16 MXU operands, f32 accum/epilogue."""
    # Layer 1: Linear(32, 128) + ReLU   (weights already bf16)
    x = x_ref[...].astype(jnp.bfloat16)
    h1 = jnp.dot(x, w1_ref[...], preferred_element_type=jnp.float32)
    h1_ref[...] = jnp.maximum(h1 + b1_ref[...], 0.0)

    # Layer 2: Linear(128, 256) + ReLU
    h2 = jnp.dot(h1_ref[...].astype(jnp.bfloat16), w2_ref[...],
                 preferred_element_type=jnp.float32)
    h2_ref[...] = jnp.maximum(h2 + b2_ref[...], 0.0)

    # Layer 3: Linear(256, 896-padded) (no activation); lane-dense store.
    y = jnp.dot(h2_ref[...].astype(jnp.bfloat16), w3_ref[...],
                preferred_element_type=jnp.float32)
    o_ref[...] = (y + b3_ref[...]).astype(o_ref.dtype)


def decoder_forward(sample, params, *, block_b=512):
    """sample: (B, Z_DIM) float32 -> (B, 1, 28, 28) float32 (NCHW)."""
    w1, b1, w2, b2, w3, b3 = params
    B = sample.shape[0]

    # Pick the batch tile: multiple of 8 sublanes, capped at block_b.
    TB = min(block_b, _round_up(B, 8))
    TB = _round_up(TB, 8)
    Bp = _round_up(B, TB)
    if Bp != B:
        sample = jnp.pad(sample, ((0, Bp - B), (0, 0)))

    # One-time parameter conditioning (cheap XLA plumbing; constant under jit
    # when params are closure constants): bf16 matmul operands, lane-dense W3.
    w1b = w1.astype(jnp.bfloat16)
    w2b = w2.astype(jnp.bfloat16)
    w3b = jnp.pad(w3, ((0, 0), (0, OUT_PAD - OUT))).astype(jnp.bfloat16)
    b3p = jnp.pad(b3, ((0, 0), (0, OUT_PAD - OUT)))
    b1f = b1.astype(jnp.float32)
    b2f = b2.astype(jnp.float32)
    b3f = b3p.astype(jnp.float32)

    grid = (Bp // TB,)

    flops = 2 * Bp * (Z_DIM * H1 + H1 * H2 + H2 * OUT_PAD)
    bytes_accessed = (
        Bp * Z_DIM * 4 + Bp * OUT_PAD * 4            # activations in/out (f32)
        + (Z_DIM * H1 + H1 * H2 + H2 * OUT_PAD) * 2  # bf16 weights
        + (H1 + H2 + OUT_PAD) * 4)                   # f32 biases

    out_padded = pl.pallas_call(
        _decoder_mlp_kernel,
        out_shape=jax.ShapeDtypeStruct((Bp, OUT_PAD), jnp.float32),
        grid=grid,
        in_specs=[
            pl.BlockSpec((TB, Z_DIM), lambda i: (i, 0)),     # sample tile
            pl.BlockSpec((Z_DIM, H1), lambda i: (0, 0)),     # w1 (resident)
            pl.BlockSpec((1, H1), lambda i: (0, 0)),         # b1
            pl.BlockSpec((H1, H2), lambda i: (0, 0)),        # w2
            pl.BlockSpec((1, H2), lambda i: (0, 0)),         # b2
            pl.BlockSpec((H2, OUT_PAD), lambda i: (0, 0)),   # w3 (padded)
            pl.BlockSpec((1, OUT_PAD), lambda i: (0, 0)),    # b3 (padded)
        ],
        out_specs=pl.BlockSpec((TB, OUT_PAD), lambda i: (i, 0)),
        scratch_shapes=[
            pltpu.VMEM((TB, H1), jnp.float32),
            pltpu.VMEM((TB, H2), jnp.float32),
        ],
        compiler_params=pltpu.CompilerParams(
            dimension_semantics=("parallel",)),
        cost_estimate=pl.CostEstimate(
            flops=flops, transcendentals=0, bytes_accessed=bytes_accessed),
    )(sample, w1b, b1f, w2b, b2f, w3b, b3f)

    # Drop batch padding and lane padding, then PyTorch-style NCHW view.
    return out_padded[:B, :OUT].reshape(B, 1, 28, 28)


def init_params(key):
    """Deterministic synthetic init matching nn.Linear shapes.

    PyTorch stores weight as (out, in); we store the transpose (in, out) so the
    kernel can do x @ W directly. Uniform(-1/sqrt(fan_in), 1/sqrt(fan_in)) like
    PyTorch's default Linear init.
    """
    ks = jax.random.split(key, 6)

    def lin(kw, kb, fan_in, fan_out):
        bound = 1.0 / jnp.sqrt(jnp.float32(fan_in))
        w = jax.random.uniform(kw, (fan_in, fan_out), jnp.float32, -bound, bound)
        b = jax.random.uniform(kb, (1, fan_out), jnp.float32, -bound, bound)
        return w, b

    w1, b1 = lin(ks[0], ks[1], Z_DIM, H1)
    w2, b2 = lin(ks[2], ks[3], H1, H2)
    w3, b3 = lin(ks[4], ks[5], H2, OUT)
    return (w1, b1, w2, b2, w3, b3)


def _reference_forward(sample, params):
    """Plain-JAX f32 reference for correctness checking."""
    w1, b1, w2, b2, w3, b3 = params
    h1 = jnp.maximum(sample @ w1 + b1, 0.0)
    h2 = jnp.maximum(h1 @ w2 + b2, 0.0)
    y = h2 @ w3 + b3
    return y.reshape(sample.shape[0], 1, 28, 28)


if __name__ == "__main__":
    key = jax.random.PRNGKey(0)
    k_params, k_sample = jax.random.split(key)

    params = init_params(k_params)

    B = 20  # small batch (not a multiple of the tile -> exercises padding)
    sample = jax.random.normal(k_sample, (B, Z_DIM), jnp.float32)

    ref = _reference_forward(sample, params)

    # 1) Default tiling: single grid step for this small batch.
    out = jax.block_until_ready(decoder_forward(sample, params))
    assert out.shape == (B, 1, 28, 28), out.shape
    assert out.dtype == jnp.float32, out.dtype
    assert jnp.allclose(out, ref, atol=3e-2, rtol=3e-2), (
        "mismatch vs reference (default tile): max abs err "
        f"{jnp.max(jnp.abs(out - ref))}")

    # 2) Small tile: multi-step grid exercising the batch pipeline + padding.
    out2 = jax.block_until_ready(
        functools.partial(decoder_forward, block_b=8)(sample, params))
    assert out2.shape == (B, 1, 28, 28), out2.shape
    assert jnp.allclose(out2, ref, atol=3e-2, rtol=3e-2), (
        "mismatch vs reference (TB=8): max abs err "
        f"{jnp.max(jnp.abs(out2 - ref))}")

    print("KERNEL_OK")
</pallas_src>

<mosaic_0001>
module attributes {stable_mosaic.version = 11 : i64} {
  func.func @_decoder_mlp_kernel(%arg0: i32, %arg1: memref<24x32xf32, #tpu.memory_space<vmem>>, %arg2: memref<32x128xbf16, #tpu.memory_space<vmem>>, %arg3: memref<1x128xf32, #tpu.memory_space<vmem>>, %arg4: memref<128x256xbf16, #tpu.memory_space<vmem>>, %arg5: memref<1x256xf32, #tpu.memory_space<vmem>>, %arg6: memref<256x896xbf16, #tpu.memory_space<vmem>>, %arg7: memref<1x896xf32, #tpu.memory_space<vmem>>, %arg8: memref<24x896xf32, #tpu.memory_space<vmem>>, %arg9: memref<24x128xf32, #tpu.memory_space<vmem>>, %arg10: memref<24x256xf32, #tpu.memory_space<vmem>>) attributes {dimension_semantics = [#tpu.dimension_semantics<parallel>], iteration_bounds = array<i64: 1>, scalar_prefetch = 0 : i64, scratch_operands = 2 : i64, tpu.core_type = #tpu.core_type<tc>, window_params = [{transform_indices = @transform_0, window_bounds = array<i64: 24, 32>}, {pipeline_mode = #tpu.pipeline_mode<synchronous>, transform_indices = @transform_1, window_bounds = array<i64: 32, 128>}, {pipeline_mode = #tpu.pipeline_mode<synchronous>, transform_indices = @transform_2, window_bounds = array<i64: 1, 128>}, {pipeline_mode = #tpu.pipeline_mode<synchronous>, transform_indices = @transform_3, window_bounds = array<i64: 128, 256>}, {pipeline_mode = #tpu.pipeline_mode<synchronous>, transform_indices = @transform_4, window_bounds = array<i64: 1, 256>}, {pipeline_mode = #tpu.pipeline_mode<synchronous>, transform_indices = @transform_5, window_bounds = array<i64: 256, 896>}, {pipeline_mode = #tpu.pipeline_mode<synchronous>, transform_indices = @transform_6, window_bounds = array<i64: 1, 896>}, {transform_indices = @transform_7, window_bounds = array<i64: 24, 896>}]} {
    %c0 = arith.constant 0 : index
    %c0_0 = arith.constant 0 : index
    %0 = vector.load %arg1[%c0, %c0_0] : memref<24x32xf32, #tpu.memory_space<vmem>>, vector<24x32xf32>
    %1 = arith.truncf %0 : vector<24x32xf32> to vector<24x32xbf16>
    %c0_1 = arith.constant 0 : index
    %c0_2 = arith.constant 0 : index
    %2 = vector.load %arg2[%c0_1, %c0_2] : memref<32x128xbf16, #tpu.memory_space<vmem>>, vector<32x128xbf16>
    %cst = arith.constant dense<0.000000e+00> : vector<24x128xf32>
    %3 = tpu.matmul %1, %2, %cst {dimension_numbers = #tpu.dot_dimension_numbers<[1], [0], [0], [1], [0, 0, 1, 1], [], []>} : vector<24x32xbf16>, vector<32x128xbf16>, vector<24x128xf32> -> vector<24x128xf32>
    %c0_3 = arith.constant 0 : index
    %c0_4 = arith.constant 0 : index
    %4 = vector.load %arg3[%c0_3, %c0_4] : memref<1x128xf32, #tpu.memory_space<vmem>>, vector<1x128xf32>
    %5 = vector.broadcast %4 : vector<1x128xf32> to vector<24x128xf32>
    %6 = arith.addf %3, %5 : vector<24x128xf32>
    %cst_5 = arith.constant 0.000000e+00 : f32
    %7 = vector.broadcast %cst_5 : f32 to vector<24x128xf32>
    %8 = arith.maximumf %6, %7 : vector<24x128xf32>
    %c0_6 = arith.constant 0 : index
    %c0_7 = arith.constant 0 : index
    %9 = vector.load %arg9[%c0_6, %c0_7] : memref<24x128xf32, #tpu.memory_space<vmem>>, vector<24x128xf32>
    tpu.vector_store %arg9[%c0_6, %c0_7], %8 {strides = array<i32>} : memref<24x128xf32, #tpu.memory_space<vmem>>, vector<24x128xf32>,
    %c0_8 = arith.constant 0 : index
    %c0_9 = arith.constant 0 : index
    %10 = vector.load %arg9[%c0_8, %c0_9] : memref<24x128xf32, #tpu.memory_space<vmem>>, vector<24x128xf32>
    %11 = arith.truncf %10 : vector<24x128xf32> to vector<24x128xbf16>
    %c0_10 = arith.constant 0 : index
    %c0_11 = arith.constant 0 : index
    %12 = vector.load %arg4[%c0_10, %c0_11] : memref<128x256xbf16, #tpu.memory_space<vmem>>, vector<128x256xbf16>
    %cst_12 = arith.constant dense<0.000000e+00> : vector<24x256xf32>
    %13 = tpu.matmul %11, %12, %cst_12 {dimension_numbers = #tpu.dot_dimension_numbers<[1], [0], [0], [1], [0, 0, 1, 1], [], []>} : vector<24x128xbf16>, vector<128x256xbf16>, vector<24x256xf32> -> vector<24x256xf32>
    %c0_13 = arith.constant 0 : index
    %c0_14 = arith.constant 0 : index
    %14 = vector.load %arg5[%c0_13, %c0_14] : memref<1x256xf32, #tpu.memory_space<vmem>>, vector<1x256xf32>
    %15 = vector.broadcast %14 : vector<1x256xf32> to vector<24x256xf32>
    %16 = arith.addf %13, %15 : vector<24x256xf32>
    %cst_15 = arith.constant 0.000000e+00 : f32
    %17 = vector.broadcast %cst_15 : f32 to vector<24x256xf32>
    %18 = arith.maximumf %16, %17 : vector<24x256xf32>
    %c0_16 = arith.constant 0 : index
    %c0_17 = arith.constant 0 : index
    %19 = vector.load %arg10[%c0_16, %c0_17] : memref<24x256xf32, #tpu.memory_space<vmem>>, vector<24x256xf32>
    tpu.vector_store %arg10[%c0_16, %c0_17], %18 {strides = array<i32>} : memref<24x256xf32, #tpu.memory_space<vmem>>, vector<24x256xf32>,
    %c0_18 = arith.constant 0 : index
    %c0_19 = arith.constant 0 : index
    %20 = vector.load %arg10[%c0_18, %c0_19] : memref<24x256xf32, #tpu.memory_space<vmem>>, vector<24x256xf32>
    %21 = arith.truncf %20 : vector<24x256xf32> to vector<24x256xbf16>
    %c0_20 = arith.constant 0 : index
    %c0_21 = arith.constant 0 : index
    %22 = vector.load %arg6[%c0_20, %c0_21] : memref<256x896xbf16, #tpu.memory_space<vmem>>, vector<256x896xbf16>
    %cst_22 = arith.constant dense<0.000000e+00> : vector<24x896xf32>
    %23 = tpu.matmul %21, %22, %cst_22 {dimension_numbers = #tpu.dot_dimension_numbers<[1], [0], [0], [1], [0, 0, 1, 1], [], []>} : vector<24x256xbf16>, vector<256x896xbf16>, vector<24x896xf32> -> vector<24x896xf32>
    %c0_23 = arith.constant 0 : index
    %c0_24 = arith.constant 0 : index
    %24 = vector.load %arg7[%c0_23, %c0_24] : memref<1x896xf32, #tpu.memory_space<vmem>>, vector<1x896xf32>
    %25 = vector.broadcast %24 : vector<1x896xf32> to vector<24x896xf32>
    %26 = arith.addf %23, %25 : vector<24x896xf32>
    %c0_25 = arith.constant 0 : index
    %c0_26 = arith.constant 0 : index
    %27 = vector.load %arg8[%c0_25, %c0_26] : memref<24x896xf32, #tpu.memory_space<vmem>>, vector<24x896xf32>
    tpu.vector_store %arg8[%c0_25, %c0_26], %26 {strides = array<i32>} : memref<24x896xf32, #tpu.memory_space<vmem>>, vector<24x896xf32>,
    return
  }
  func.func @transform_0(%arg0: i32) -> (i32, i32) {
    %c0_i32 = arith.constant 0 : i32
    %c0_i32_0 = arith.constant 0 : i32
    return %arg0, %c0_i32 : i32, i32
  }
  func.func @transform_1(%arg0: i32) -> (i32, i32) {
    %c0_i32 = arith.constant 0 : i32
    %c0_i32_0 = arith.constant 0 : i32
    %c0_i32_1 = arith.constant 0 : i32
    return %c0_i32, %c0_i32_0 : i32, i32
  }
  func.func @transform_2(%arg0: i32) -> (i32, i32) {
    %c0_i32 = arith.constant 0 : i32
    %c0_i32_0 = arith.constant 0 : i32
    %c0_i32_1 = arith.constant 0 : i32
    return %c0_i32, %c0_i32_0 : i32, i32
  }
  func.func @transform_3(%arg0: i32) -> (i32, i32) {
    %c0_i32 = arith.constant 0 : i32
    %c0_i32_0 = arith.constant 0 : i32
    %c0_i32_1 = arith.constant 0 : i32
    return %c0_i32, %c0_i32_0 : i32, i32
  }
  func.func @transform_4(%arg0: i32) -> (i32, i32) {
    %c0_i32 = arith.constant 0 : i32
    %c0_i32_0 = arith.constant 0 : i32
    %c0_i32_1 = arith.constant 0 : i32
    return %c0_i32, %c0_i32_0 : i32, i32
  }
  func.func @transform_5(%arg0: i32) -> (i32, i32) {
    %c0_i32 = arith.constant 0 : i32
    %c0_i32_0 = arith.constant 0 : i32
    %c0_i32_1 = arith.constant 0 : i32
    return %c0_i32, %c0_i32_0 : i32, i32
  }
  func.func @transform_6(%arg0: i32) -> (i32, i32) {
    %c0_i32 = arith.constant 0 : i32
    %c0_i32_0 = arith.constant 0 : i32
    %c0_i32_1 = arith.constant 0 : i32
    return %c0_i32, %c0_i32_0 : i32, i32
  }
  func.func @transform_7(%arg0: i32) -> (i32, i32) {
    %c0_i32 = arith.constant 0 : i32
    %c0_i32_0 = arith.constant 0 : i32
    return %arg0, %c0_i32 : i32, i32
  }
}

</mosaic_0001>

<llo_original>
// kernel: tpu_custom_call.1
$region0: #{tpu_custom_call.1}
  #allocation0 [shape = 'u32[]', space=smem, size = 0x4, offset = 0x4, fixed_abs, tag = 'smem constant byte address 0x4 - core index']
  #allocation1 [shape = 'u32[144,128]{1,0:T(1,128)}', space=vmem, size = 0x12000, scoped, tag = 'internal scratch']
  #allocation2 [shape = 'f32[24,128]{1,0:T(8,128)}', space=vmem, size = 0x3000, scoped, tag = 'scratch operand']
  #allocation3 [shape = 'f32[24,256]{1,0:T(8,128)}', space=vmem, size = 0x6000, scoped, tag = 'scratch operand']
  %s0 = inlined_call_operand.hbm [shape: f32[24,32], index: 0, kind: input, shape index: {}]
  %s1 = inlined_call_operand.hbm [shape: bf16[32,128], index: 1, kind: input, shape index: {}]
  %s2 = inlined_call_operand.vmem [shape: f32[1,128], index: 2, kind: input, shape index: {}]
  %s3 = inlined_call_operand.hbm [shape: bf16[128,256], index: 3, kind: input, shape index: {}]
  %s4 = inlined_call_operand.vmem [shape: f32[1,256], index: 4, kind: input, shape index: {}]
  %s5 = inlined_call_operand.hbm [shape: bf16[256,896], index: 5, kind: input, shape index: {}]
  %s6 = inlined_call_operand.vmem [shape: f32[1,896], index: 6, kind: input, shape index: {}]
  %s7 = inlined_call_operand.hbm [shape: f32[24,896], index: 7, kind: output, shape index: {}]
  %s8 = sld [smem:[#allocation0]]
  $region54: #{tpu_custom_call.1} parent=0
    _
  %s10 = ssub.s32 1, %s8
  %s11 = scalar_select 0, %s10, %s8
  $region1: #{tpu_custom_call.1} parent=0
    #allocation4 [shape = 'u8[12288]{0}', space=vmem, size = 0x3000, scoped, tag = 'input window, operand 0, single buffered']
    #allocation5 [shape = 's32[1]{0}', space=sflag, size = 0x4, scoped, tag = 'scoped memory for tpu_custom_call.1']
    #allocation6 [shape = 's32[1]{0}', space=sflag, size = 0x4, scoped, tag = 'scoped memory for tpu_custom_call.1']
    #allocation7 [shape = 'u8[8192]{0}', space=vmem, size = 0x2000, scoped, tag = 'input window, operand 1, single buffered']
    #allocation8 [shape = 's32[1]{0}', space=sflag, size = 0x4, scoped, tag = 'scoped memory for tpu_custom_call.1']
    #allocation9 [shape = 'u8[65536]{0}', space=vmem, size = 0x10000, scoped, tag = 'input window, operand 3, single buffered']
    #allocation10 [shape = 'u8[458752]{0}', space=vmem, size = 0x70000, scoped, tag = 'input window, operand 5, single buffered']
    #allocation11 [shape = 's32[1]{0}', space=sflag, size = 0x4, scoped, tag = 'scoped memory for tpu_custom_call.1']
    #allocation12 [shape = 'u8[86016]{0}', space=vmem, size = 0x15000, scoped, tag = 'output window, operand 0, single buffered']
    %12 = vsyncpa [#allocation5], 0
    %13 = vsyncpa [#allocation8], 0
    %14 = vsyncpa [#allocation11], 0
    %15 = vsyncpa [#allocation6], 0
    // Predicated region
    $region2: #{tpu_custom_call.1} parent=1 // pred_check
      _
    $region3: #{tpu_custom_call.1} parent=1 // pred_check_branch
      %17 = sbr.rel (0) target = $region5
    $region4: #{tpu_custom_call.1} parent=1 // pred_region
      %s19 = ssub.s32 384, 384
      %20 = vsyncadd [#allocation5], %s19
      %s21 = sshll.u32 [#allocation4], 4
      %s22 = int_to_ptr.vmem [resolvable:$true] %s21
      %27 = dma.hbm_to_vmem [thread:$0]  %s0, 384, %s22, [#allocation5], 128, 128, 8
    $region5: #{tpu_custom_call.1} parent=1 // pred_fallthru
      _
    // Predicated region
    $region6: #{tpu_custom_call.1} parent=1 // pred_check
      _
    $region7: #{tpu_custom_call.1} parent=1 // pred_check_branch
      %29 = sbr.rel (0) target = $region9
    $region8: #{tpu_custom_call.1} parent=1 // pred_region
      %s31 = ssub.s32 256, 256
      %32 = vsyncadd [#allocation8], %s31
      %s33 = sshll.u32 [#allocation7], 4
      %s34 = int_to_ptr.vmem [resolvable:$true] %s33
      %39 = dma.hbm_to_vmem [thread:$0]  %s1, 256, %s34, [#allocation8], 64, 64, 4
    $region9: #{tpu_custom_call.1} parent=1 // pred_fallthru
      _
    // Predicated region
    $region10: #{tpu_custom_call.1} parent=1 // pred_check
      _
    $region11: #{tpu_custom_call.1} parent=1 // pred_check_branch
      %41 = sbr.rel (0) target = $region13
    $region12: #{tpu_custom_call.1} parent=1 // pred_region
      _
    $region13: #{tpu_custom_call.1} parent=1 // pred_fallthru
      _
    // Predicated region
    $region14: #{tpu_custom_call.1} parent=1 // pred_check
      _
    $region15: #{tpu_custom_call.1} parent=1 // pred_check_branch
      %43 = sbr.rel (0) target = $region17
    $region16: #{tpu_custom_call.1} parent=1 // pred_region
      %s45 = ssub.s32 2048, 2048
      %46 = vsyncadd [#allocation8], %s45
      %s47 = sshll.u32 [#allocation9], 4
      %s48 = int_to_ptr.vmem [resolvable:$true] %s47
      %53 = dma.hbm_to_vmem [thread:$0]  %s3, 2048, %s48, [#allocation8], 128, 128, 8
    $region17: #{tpu_custom_call.1} parent=1 // pred_fallthru
      _
    // Predicated region
    $region18: #{tpu_custom_call.1} parent=1 // pred_check
      _
    $region19: #{tpu_custom_call.1} parent=1 // pred_check_branch
      %55 = sbr.rel (0) target = $region21
    $region20: #{tpu_custom_call.1} parent=1 // pred_region
      _
    $region21: #{tpu_custom_call.1} parent=1 // pred_fallthru
      _
    // Predicated region
    $region22: #{tpu_custom_call.1} parent=1 // pred_check
      _
    $region23: #{tpu_custom_call.1} parent=1 // pred_check_branch
      %57 = sbr.rel (0) target = $region25
    $region24: #{tpu_custom_call.1} parent=1 // pred_region
      %s59 = ssub.s32 14336, 14336
      %60 = vsyncadd [#allocation11], %s59
      %s61 = sshll.u32 [#allocation10], 4
      %s62 = int_to_ptr.vmem [resolvable:$true] %s61
      %67 = dma.hbm_to_vmem [thread:$0]  %s5, 14336, %s62, [#allocation11], 448, 448, 28
    $region25: #{tpu_custom_call.1} parent=1 // pred_fallthru
      _
    // Predicated region
    $region26: #{tpu_custom_call.1} parent=1 // pred_check
      _
    $region27: #{tpu_custom_call.1} parent=1 // pred_check_branch
      %69 = sbr.rel (0) target = $region29
    $region28: #{tpu_custom_call.1} parent=1 // pred_region
      _
    $region29: #{tpu_custom_call.1} parent=1 // pred_fallthru
      _
    // Predicated region
    $region30: #{tpu_custom_call.1} parent=1 // pred_check
      _
    $region31: #{tpu_custom_call.1} parent=1 // pred_check_branch
      %71 = sbr.rel (0) target = $region33
    $region32: #{tpu_custom_call.1} parent=1 // pred_region
      %72 = dma.done [#allocation5], 384
    $region33: #{tpu_custom_call.1} parent=1 // pred_fallthru
      _
    // Predicated region
    $region34: #{tpu_custom_call.1} parent=1 // pred_check
      _
    $region35: #{tpu_custom_call.1} parent=1 // pred_check_branch
      %74 = sbr.rel (0) target = $region37
    $region36: #{tpu_custom_call.1} parent=1 // pred_region
      %75 = dma.done [#allocation8], 256
    $region37: #{tpu_custom_call.1} parent=1 // pred_fallthru
      _
    // Predicated region
    $region38: #{tpu_custom_call.1} parent=1 // pred_check
      _
    $region39: #{tpu_custom_call.1} parent=1 // pred_check_branch
      %77 = sbr.rel (0) target = $region41
    $region40: #{tpu_custom_call.1} parent=1 // pred_region
      %78 = dma.done [#allocation8], 2048
    $region41: #{tpu_custom_call.1} parent=1 // pred_fallthru
      _
    // Predicated region
    $region42: #{tpu_custom_call.1} parent=1 // pred_check
      _
    $region43: #{tpu_custom_call.1} parent=1 // pred_check_branch
      %80 = sbr.rel (0) target = $region45
    $region44: #{tpu_custom_call.1} parent=1 // pred_region
      %81 = dma.done [#allocation11], 14336
    $region45: #{tpu_custom_call.1} parent=1 // pred_fallthru
      _
    %v83 = vld [vmem:[#allocation4] sm:$0xff]
    %v84 = vld [vmem:[#allocation4 + $0x8] sm:$0xff]
    %v85 = vld [vmem:[#allocation4 + $0x10] sm:$0xff]
    %v86 = vpack.c.bf16 %v84, %v83
    %v87 = vpack.c.bf16 %v85, %v85
    %v88 = vld [vmem:[#allocation7] sm:$0xf]
    %v89 = vld [vmem:[#allocation7 + $0x4] sm:$0xf]
    %v90 = vld [vmem:[#allocation7 + $0x8] sm:$0xf]
    %v91 = vld [vmem:[#allocation7 + $0xc] sm:$0xf]
    %v92 = vld [vmem:[%s2] sm:$0x1]
    %v94 = vlaneseq
    %v95 = vshrl.u32 %v94, 7
    %v96 = vsub.s32 0, %v95
    %v97 = vrot.slane %v92, %v96
    %v103 = vunpack.c.l.b16 %v88
    %v104 = vunpack.c.l.b16 %v89
    %v105 = vunpack.c.l.b16 %v90
    %v106 = vunpack.c.l.b16 %v91
    %v107 = vpack.c.b16 %v104, %v103
    %v108 = vpack.c.b16 %v106, %v105
    %vm111 = vcmask 261120
    %v113 = vsel %vm111, %v86, 0
    %v116 = vsel %vm111, %v87, 0
    %118 = vmatprep.subr.bf16.mxu0 0
    %119 = vmatpush1.bf16.msra.mxu0 %v107
    %120 = vmatprep.subr.bf16.mxu0 0
    %121 = vmatpush1.bf16.msra.mxu0 %v108
    %122 = vmatprep.subr.bf16.mxu0 0
    %123 = vmatpush1.bf16.msra.mxu0 0
    %124 = vmatprep.subr.bf16.mxu0 0
    %125 = vmatpush1.bf16.msra.mxu0 0
    %126 = vmatprep.subr.bf16.mxu0 0
    %127 = vmatpush1.bf16.msra.mxu0 0
    %128 = vmatprep.subr.bf16.mxu0 0
    %129 = vmatpush1.bf16.msra.mxu0 0
    %130 = vmatprep.subr.bf16.mxu0 0
    %131 = vmatpush1.bf16.msra.mxu0 0
    %132 = vmatprep.subr.bf16.mxu0 0
    %133 = vmatpush1.bf16.msra.mxu0 0
    %134 = vmatprep.subr.bf16.mxu0 0
    %135 = vmatpush1.bf16.msra.mxu0 0
    %136 = vmatprep.subr.bf16.mxu0 0
    %137 = vmatpush1.bf16.msra.mxu0 0
    %138 = vmatprep.subr.bf16.mxu0 0
    %139 = vmatpush1.bf16.msra.mxu0 0
    %140 = vmatprep.subr.bf16.mxu0 0
    %141 = vmatpush1.bf16.msra.mxu0 0
    %142 = vmatprep.subr.bf16.mxu0 0
    %143 = vmatpush1.bf16.msra.mxu0 0
    %144 = vmatprep.subr.bf16.mxu0 0
    %145 = vmatpush1.bf16.msra.mxu0 0
    %146 = vmatprep.subr.bf16.mxu0 0
    %147 = vmatpush1.bf16.msra.mxu0 0
    %148 = vmatprep.subr.bf16.mxu0 0
    %149 = vmatpush1.bf16.msra.mxu0 0
    %150 = vmatprep.mubr.bf16.mxu0 0
    %151 = vmatmul.mubr.bf16.gmra.mrb[0].mxu0 %v113
    %v152 = vpop.f32.mrb[0].mxu0
    %v153 = vadd.f32 %v97, %v152
    %v154 = vpop.f32.mrb[0].mxu0
    %v155 = vpop.f32.mrb[0].mxu0
    %v156 = vadd.f32 %v97, %v155
    %v157 = vpop.f32.mrb[0].mxu0
    %158 = vmatprep.mubr.bf16.mxu0 0
    %159 = vmatmul.mubr.bf16.gmra.mrb[0].mxu0 %v116
    %v160 = vpop.f32.mrb[0].mxu0
    %v161 = vadd.f32 %v97, %v160
    %v162 = vpop.f32.mrb[0].mxu0
    %v163 = vpop.f32.mrb[0].mxu0
    %v164 = vpop.f32.mrb[0].mxu0
    %165 = vdwg.mxu0
    %v166 = vmax.f32 %v153, 0.0
    %v167 = vmax.f32 %v156, 0.0
    %v168 = vmax.f32 %v161, 0.0
    %169 = vst [vmem:[#allocation2] sm:$0xff] %v166
    %170 = vst [vmem:[#allocation2 + $0x8] sm:$0xff] %v167
    %171 = vst [vmem:[#allocation2 + $0x10] sm:$0xff] %v168
    %v172 = vld [vmem:[#allocation2] sm:$0xff]
    %v173 = vld [vmem:[#allocation2 + $0x8] sm:$0xff]
    %v174 = vld [vmem:[#allocation2 + $0x10] sm:$0xff]
    %v175 = vpack.c.bf16 %v173, %v172
    %v176 = vpack.c.bf16 %v174, %v174
    %v177 = vld [vmem:[#allocation9] sm:$0xff]
    %v178 = vld [vmem:[#allocation9 + $0x8] sm:$0xff]
    %v179 = vld [vmem:[#allocation9 + $0x10] sm:$0xff]
    %v180 = vld [vmem:[#allocation9 + $0x18] sm:$0xff]
    %v181 = vld [vmem:[#allocation9 + $0x20] sm:$0xff]
    %v182 = vld [vmem:[#allocation9 + $0x28] sm:$0xff]
    %v183 = vld [vmem:[#allocation9 + $0x30] sm:$0xff]
    %v184 = vld [vmem:[#allocation9 + $0x38] sm:$0xff]
    %v185 = vld [vmem:[#allocation9 + $0x40] sm:$0xff]
    %v186 = vld [vmem:[#allocation9 + $0x48] sm:$0xff]
    %v187 = vld [vmem:[#allocation9 + $0x50] sm:$0xff]
    %v188 = vld [vmem:[#allocation9 + $0x58] sm:$0xff]
    %v189 = vld [vmem:[#allocation9 + $0x60] sm:$0xff]
    %v190 = vld [vmem:[#allocation9 + $0x68] sm:$0xff]
    %v191 = vld [vmem:[#allocation9 + $0x70] sm:$0xff]
    %v192 = vld [vmem:[#allocation9 + $0x78] sm:$0xff]
    %v193 = vld [vmem:[%s4] sm:$0x3]
    %v195 = vlaneseq
    %v196 = vshrl.u32 %v195, 7
    %v197 = vsub.s32 0, %v196
    %v198 = vrot.slane %v193, %v197
    %v199 = vlaneseq
    %v200 = vshrl.u32 %v199, 7
    %v201 = vsub.s32 1, %v200
    %v202 = vrot.slane %v193, %v201
    %v221 = vunpack.c.l.b16 %v177
    %v222 = vunpack.c.h.b16 %v177
    %v223 = vunpack.c.l.b16 %v178
    %v224 = vunpack.c.h.b16 %v178
    %v225 = vunpack.c.l.b16 %v179
    %v226 = vunpack.c.h.b16 %v179
    %v227 = vunpack.c.l.b16 %v180
    %v228 = vunpack.c.h.b16 %v180
    %v229 = vunpack.c.l.b16 %v181
    %v230 = vunpack.c.h.b16 %v181
    %v231 = vunpack.c.l.b16 %v182
    %v232 = vunpack.c.h.b16 %v182
    %v233 = vunpack.c.l.b16 %v183
    %v234 = vunpack.c.h.b16 %v183
    %v235 = vunpack.c.l.b16 %v184
    %v236 = vunpack.c.h.b16 %v184
    %v237 = vunpack.c.l.b16 %v185
    %v238 = vunpack.c.h.b16 %v185
    %v239 = vunpack.c.l.b16 %v186
    %v240 = vunpack.c.h.b16 %v186
    %v241 = vunpack.c.l.b16 %v187
    %v242 = vunpack.c.h.b16 %v187
    %v243 = vunpack.c.l.b16 %v188
    %v244 = vunpack.c.h.b16 %v188
    %v245 = vunpack.c.l.b16 %v189
    %v246 = vunpack.c.h.b16 %v189
    %v247 = vunpack.c.l.b16 %v190
    %v248 = vunpack.c.h.b16 %v190
    %v249 = vunpack.c.l.b16 %v191
    %v250 = vunpack.c.h.b16 %v191
    %v251 = vunpack.c.l.b16 %v192
    %v252 = vunpack.c.h.b16 %v192
    %v253 = vpack.c.b16 %v223, %v221
    %v254 = vpack.c.b16 %v224, %v222
    %v255 = vpack.c.b16 %v227, %v225
    %v256 = vpack.c.b16 %v228, %v226
    %v257 = vpack.c.b16 %v231, %v229
    %v258 = vpack.c.b16 %v232, %v230
    %v259 = vpack.c.b16 %v235, %v233
    %v260 = vpack.c.b16 %v236, %v234
    %v261 = vpack.c.b16 %v239, %v237
    %v262 = vpack.c.b16 %v240, %v238
    %v263 = vpack.c.b16 %v243, %v241
    %v264 = vpack.c.b16 %v244, %v242
    %v265 = vpack.c.b16 %v247, %v245
    %v266 = vpack.c.b16 %v248, %v246
    %v267 = vpack.c.b16 %v251, %v249
    %v268 = vpack.c.b16 %v252, %v250
    %285 = vmatprep.subr.bf16.mxu0 %v254
    %286 = vmatpush1.bf16.msra.mxu0 %v253
    %287 = vmatprep.subr.bf16.mxu0 %v256
    %288 = vmatpush1.bf16.msra.mxu0 %v255
    %289 = vmatprep.subr.bf16.mxu0 %v258
    %290 = vmatpush1.bf16.msra.mxu0 %v257
    %291 = vmatprep.subr.bf16.mxu0 %v260
    %292 = vmatpush1.bf16.msra.mxu0 %v259
    %293 = vmatprep.subr.bf16.mxu0 %v262
    %294 = vmatpush1.bf16.msra.mxu0 %v261
    %295 = vmatprep.subr.bf16.mxu0 %v264
    %296 = vmatpush1.bf16.msra.mxu0 %v263
    %297 = vmatprep.subr.bf16.mxu0 %v266
    %298 = vmatpush1.bf16.msra.mxu0 %v265
    %299 = vmatprep.subr.bf16.mxu0 %v268
    %300 = vmatpush1.bf16.msra.mxu0 %v267
    %301 = vmatprep.subr.bf16.mxu0 0
    %302 = vmatpush1.bf16.msra.mxu0 0
    %303 = vmatprep.subr.bf16.mxu0 0
    %304 = vmatpush1.bf16.msra.mxu0 0
    %305 = vmatprep.subr.bf16.mxu0 0
    %306 = vmatpush1.bf16.msra.mxu0 0
    %307 = vmatprep.subr.bf16.mxu0 0
    %308 = vmatpush1.bf16.msra.mxu0 0
    %309 = vmatprep.subr.bf16.mxu0 0
    %310 = vmatpush1.bf16.msra.mxu0 0
    %311 = vmatprep.subr.bf16.mxu0 0
    %312 = vmatpush1.bf16.msra.mxu0 0
    %313 = vmatprep.subr.bf16.mxu0 0
    %314 = vmatpush1.bf16.msra.mxu0 0
    %315 = vmatprep.subr.bf16.mxu0 0
    %316 = vmatpush1.bf16.msra.mxu0 0
    %317 = vmatprep.mubr.bf16.mxu0 0
    %318 = vmatmul.mubr.bf16.gmra.mrb[0].mxu0 %v175
    %v319 = vpop.f32.mrb[0].mxu0
    %v320 = vadd.f32 %v198, %v319
    %v321 = vpop.f32.mrb[0].mxu0
    %v322 = vadd.f32 %v202, %v321
    %v323 = vpop.f32.mrb[0].mxu0
    %v324 = vadd.f32 %v198, %v323
    %v325 = vpop.f32.mrb[0].mxu0
    %v326 = vadd.f32 %v202, %v325
    %327 = vmatprep.mubr.bf16.mxu0 0
    %328 = vmatmul.mubr.bf16.gmra.mrb[0].mxu0 %v176
    %v329 = vpop.f32.mrb[0].mxu0
    %v330 = vadd.f32 %v198, %v329
    %v331 = vpop.f32.mrb[0].mxu0
    %v332 = vadd.f32 %v202, %v331
    %v333 = vpop.f32.mrb[0].mxu0
    %v334 = vpop.f32.mrb[0].mxu0
    %335 = vdwg.mxu0
    %v336 = vmax.f32 %v320, 0.0
    %v337 = vmax.f32 %v322, 0.0
    %v338 = vmax.f32 %v324, 0.0
    %v339 = vmax.f32 %v326, 0.0
    %v340 = vmax.f32 %v330, 0.0
    %v341 = vmax.f32 %v332, 0.0
    %342 = vst [vmem:[#allocation3] sm:$0xff] %v336
    %343 = vst [vmem:[#allocation3 + $0x8] sm:$0xff] %v337
    %344 = vst [vmem:[#allocation3 + $0x10] sm:$0xff] %v338
    %345 = vst [vmem:[#allocation3 + $0x18] sm:$0xff] %v339
    %346 = vst [vmem:[#allocation3 + $0x20] sm:$0xff] %v340
    %347 = vst [vmem:[#allocation3 + $0x28] sm:$0xff] %v341
    %v348 = vld [vmem:[#allocation3] sm:$0xff]
    %v349 = vld [vmem:[#allocation3 + $0x8] sm:$0xff]
    %v350 = vld [vmem:[#allocation3 + $0x10] sm:$0xff]
    %v351 = vld [vmem:[#allocation3 + $0x18] sm:$0xff]
    %v352 = vld [vmem:[#allocation3 + $0x20] sm:$0xff]
    %v353 = vld [vmem:[#allocation3 + $0x28] sm:$0xff]
    %v354 = vpack.c.bf16 %v350, %v348
    %v355 = vpack.c.bf16 %v351, %v349
    %v356 = vpack.c.bf16 %v352, %v352
    %v357 = vpack.c.bf16 %v353, %v353
    %v358 = vld [vmem:[#allocation10] sm:$0xff]
    %v359 = vld [vmem:[#allocation10 + $0x8] sm:$0xff]
    %v360 = vld [vmem:[#allocation10 + $0x10] sm:$0xff]
    %v361 = vld [vmem:[#allocation10 + $0x18] sm:$0xf]
    %v362 = vld [vmem:[#allocation10 + $0x1c] sm:$0xff]
    %v363 = vld [vmem:[#allocation10 + $0x24] sm:$0xff]
    %v364 = vld [vmem:[#allocation10 + $0x2c] sm:$0xff]
    %v365 = vld [vmem:[#allocation10 + $0x34] sm:$0xf]
    %v366 = vld [vmem:[#allocation10 + $0x38] sm:$0xff]
    %v367 = vld [vmem:[#allocation10 + $0x40] sm:$0xff]
    %v368 = vld [vmem:[#allocation10 + $0x48] sm:$0xff]
    %v369 = vld [vmem:[#allocation10 + $0x50] sm:$0xf]
    %v370 = vld [vmem:[#allocation10 + $0x54] sm:$0xff]
    %v371 = vld [vmem:[#allocation10 + $0x5c] sm:$0xff]
    %v372 = vld [vmem:[#allocation10 + $0x64] sm:$0xff]
    %v373 = vld [vmem:[#allocation10 + $0x6c] sm:$0xf]
    %v374 = vld [vmem:[#allocation10 + $0x70] sm:$0xff]
    %v375 = vld [vmem:[#allocation10 + $0x78] sm:$0xff]
    %v376 = vld [vmem:[#allocation10 + $0x80] sm:$0xff]
    %v377 = vld [vmem:[#allocation10 + $0x88] sm:$0xf]
    %v378 = vld [vmem:[#allocation10 + $0x8c] sm:$0xff]
    %v379 = vld [vmem:[#allocation10 + $0x94] sm:$0xff]
    %v380 = vld [vmem:[#allocation10 + $0x9c] sm:$0xff]
    %v381 = vld [vmem:[#allocation10 + $0xa4] sm:$0xf]
    %v382 = vld [vmem:[#allocation10 + $0xa8] sm:$0xff]
    %v383 = vld [vmem:[#allocation10 + $0xb0] sm:$0xff]
    %v384 = vld [vmem:[#allocation10 + $0xb8] sm:$0xff]
    %v385 = vld [vmem:[#allocation10 + $0xc0] sm:$0xf]
    %v386 = vld [vmem:[#allocation10 + $0xc4] sm:$0xff]
    %v387 = vld [vmem:[#allocation10 + $0xcc] sm:$0xff]
    %v388 = vld [vmem:[#allocation10 + $0xd4] sm:$0xff]
    %v389 = vld [vmem:[#allocation10 + $0xdc] sm:$0xf]
    %v390 = vld [vmem:[#allocation10 + $0xe0] sm:$0xff]
    %v391 = vld [vmem:[#allocation10 + $0xe8] sm:$0xff]
    %v392 = vld [vmem:[#allocation10 + $0xf0] sm:$0xff]
    %v393 = vld [vmem:[#allocation10 + $0xf8] sm:$0xf]
    %v394 = vld [vmem:[#allocation10 + $0xfc] sm:$0xff]
    %v395 = vld [vmem:[#allocation10 + $0x104] sm:$0xff]
    %v396 = vld [vmem:[#allocation10 + $0x10c] sm:$0xff]
    %v397 = vld [vmem:[#allocation10 + $0x114] sm:$0xf]
    %v398 = vld [vmem:[#allocation10 + $0x118] sm:$0xff]
    %v399 = vld [vmem:[#allocation10 + $0x120] sm:$0xff]
    %v400 = vld [vmem:[#allocation10 + $0x128] sm:$0xff]
    %v401 = vld [vmem:[#allocation10 + $0x130] sm:$0xf]
    %v402 = vld [vmem:[#allocation10 + $0x134] sm:$0xff]
    %v403 = vld [vmem:[#allocation10 + $0x13c] sm:$0xff]
    %v404 = vld [vmem:[#allocation10 + $0x144] sm:$0xff]
    %v405 = vld [vmem:[#allocation10 + $0x14c] sm:$0xf]
    %v406 = vld [vmem:[#allocation10 + $0x150] sm:$0xff]
    %v407 = vld [vmem:[#allocation10 + $0x158] sm:$0xff]
    %v408 = vld [vmem:[#allocation10 + $0x160] sm:$0xff]
    %v409 = vld [vmem:[#allocation10 + $0x168] sm:$0xf]
    %v410 = vld [vmem:[#allocation10 + $0x16c] sm:$0xff]
    %v411 = vld [vmem:[#allocation10 + $0x174] sm:$0xff]
    %v412 = vld [vmem:[#allocation10 + $0x17c] sm:$0xff]
    %v413 = vld [vmem:[#allocation10 + $0x184] sm:$0xf]
    %v414 = vld [vmem:[#allocation10 + $0x188] sm:$0xff]
    %v415 = vld [vmem:[#allocation10 + $0x190] sm:$0xff]
    %v416 = vld [vmem:[#allocation10 + $0x198] sm:$0xff]
    %v417 = vld [vmem:[#allocation10 + $0x1a0] sm:$0xf]
    %v418 = vld [vmem:[#allocation10 + $0x1a4] sm:$0xff]
    %v419 = vld [vmem:[#allocation10 + $0x1ac] sm:$0xff]
    %v420 = vld [vmem:[#allocation10 + $0x1b4] sm:$0xff]
    %v421 = vld [vmem:[#allocation10 + $0x1bc] sm:$0xf]
    %v422 = vld [vmem:[#allocation10 + $0x1c0] sm:$0xff]
    %v423 = vld [vmem:[#allocation10 + $0x1c8] sm:$0xff]
    %v424 = vld [vmem:[#allocation10 + $0x1d0] sm:$0xff]
    %v425 = vld [vmem:[#allocation10 + $0x1d8] sm:$0xf]
    %v426 = vld [vmem:[#allocation10 + $0x1dc] sm:$0xff]
    %v427 = vld [vmem:[#allocation10 + $0x1e4] sm:$0xff]
    %v428 = vld [vmem:[#allocation10 + $0x1ec] sm:$0xff]
    %v429 = vld [vmem:[#allocation10 + $0x1f4] sm:$0xf]
    %v430 = vld [vmem:[#allocation10 + $0x1f8] sm:$0xff]
    %v431 = vld [vmem:[#allocation10 + $0x200] sm:$0xff]
    %v432 = vld [vmem:[#allocation10 + $0x208] sm:$0xff]
    %v433 = vld [vmem:[#allocation10 + $0x210] sm:$0xf]
    %v434 = vld [vmem:[#allocation10 + $0x214] sm:$0xff]
    %v435 = vld [vmem:[#allocation10 + $0x21c] sm:$0xff]
    %v436 = vld [vmem:[#allocation10 + $0x224] sm:$0xff]
    %v437 = vld [vmem:[#allocation10 + $0x22c] sm:$0xf]
    %v438 = vld [vmem:[#allocation10 + $0x230] sm:$0xff]
    %v439 = vld [vmem:[#allocation10 + $0x238] sm:$0xff]
    %v440 = vld [vmem:[#allocation10 + $0x240] sm:$0xff]
    %v441 = vld [vmem:[#allocation10 + $0x248] sm:$0xf]
    %v442 = vld [vmem:[#allocation10 + $0x24c] sm:$0xff]
    %v443 = vld [vmem:[#allocation10 + $0x254] sm:$0xff]
    %v444 = vld [vmem:[#allocation10 + $0x25c] sm:$0xff]
    %v445 = vld [vmem:[#allocation10 + $0x264] sm:$0xf]
    %v446 = vld [vmem:[#allocation10 + $0x268] sm:$0xff]
    %v447 = vld [vmem:[#allocation10 + $0x270] sm:$0xff]
    %v448 = vld [vmem:[#allocation10 + $0x278] sm:$0xff]
    %v449 = vld [vmem:[#allocation10 + $0x280] sm:$0xf]
    %v450 = vld [vmem:[#allocation10 + $0x284] sm:$0xff]
    %v451 = vld [vmem:[#allocation10 + $0x28c] sm:$0xff]
    %v452 = vld [vmem:[#allocation10 + $0x294] sm:$0xff]
    %v453 = vld [vmem:[#allocation10 + $0x29c] sm:$0xf]
    %v454 = vld [vmem:[#allocation10 + $0x2a0] sm:$0xff]
    %v455 = vld [vmem:[#allocation10 + $0x2a8] sm:$0xff]
    %v456 = vld [vmem:[#allocation10 + $0x2b0] sm:$0xff]
    %v457 = vld [vmem:[#allocation10 + $0x2b8] sm:$0xf]
    %v458 = vld [vmem:[#allocation10 + $0x2bc] sm:$0xff]
    %v459 = vld [vmem:[#allocation10 + $0x2c4] sm:$0xff]
    %v460 = vld [vmem:[#allocation10 + $0x2cc] sm:$0xff]
    %v461 = vld [vmem:[#allocation10 + $0x2d4] sm:$0xf]
    %v462 = vld [vmem:[#allocation10 + $0x2d8] sm:$0xff]
    %v463 = vld [vmem:[#allocation10 + $0x2e0] sm:$0xff]
    %v464 = vld [vmem:[#allocation10 + $0x2e8] sm:$0xff]
    %v465 = vld [vmem:[#allocation10 + $0x2f0] sm:$0xf]
    %v466 = vld [vmem:[#allocation10 + $0x2f4] sm:$0xff]
    %v467 = vld [vmem:[#allocation10 + $0x2fc] sm:$0xff]
    %v468 = vld [vmem:[#allocation10 + $0x304] sm:$0xff]
    %v469 = vld [vmem:[#allocation10 + $0x30c] sm:$0xf]
    %v470 = vld [vmem:[#allocation10 + $0x310] sm:$0xff]
    %v471 = vld [vmem:[#allocation10 + $0x318] sm:$0xff]
    %v472 = vld [vmem:[#allocation10 + $0x320] sm:$0xff]
    %v473 = vld [vmem:[#allocation10 + $0x328] sm:$0xf]
    %v474 = vld [vmem:[#allocation10 + $0x32c] sm:$0xff]
    %v475 = vld [vmem:[#allocation10 + $0x334] sm:$0xff]
    %v476 = vld [vmem:[#allocation10 + $0x33c] sm:$0xff]
    %v477 = vld [vmem:[#allocation10 + $0x344] sm:$0xf]
    %v478 = vld [vmem:[#allocation10 + $0x348] sm:$0xff]
    %v479 = vld [vmem:[#allocation10 + $0x350] sm:$0xff]
    %v480 = vld [vmem:[#allocation10 + $0x358] sm:$0xff]
    %v481 = vld [vmem:[#allocation10 + $0x360] sm:$0xf]
    %v482 = vld [vmem:[#allocation10 + $0x364] sm:$0xff]
    %v483 = vld [vmem:[#allocation10 + $0x36c] sm:$0xff]
    %v484 = vld [vmem:[#allocation10 + $0x374] sm:$0xff]
    %v485 = vld [vmem:[#allocation10 + $0x37c] sm:$0xf]
    %v486 = vld [vmem:[%s6] sm:$0xff]
    %v488 = vlaneseq
    %v489 = vshrl.u32 %v488, 7
    %v490 = vsub.s32 0, %v489
    %v491 = vrot.slane %v486, %v490
    %v492 = vlaneseq
    %v493 = vshrl.u32 %v492, 7
    %v494 = vsub.s32 1, %v493
    %v495 = vrot.slane %v486, %v494
    %v496 = vlaneseq
    %v497 = vshrl.u32 %v496, 7
    %v498 = vsub.s32 2, %v497
    %v499 = vrot.slane %v486, %v498
    %v500 = vlaneseq
    %v501 = vshrl.u32 %v500, 7
    %v502 = vsub.s32 3, %v501
    %v503 = vrot.slane %v486, %v502
    %v504 = vlaneseq
    %v505 = vshrl.u32 %v504, 7
    %v506 = vsub.s32 4, %v505
    %v507 = vrot.slane %v486, %v506
    %v508 = vlaneseq
    %v509 = vshrl.u32 %v508, 7
    %v510 = vsub.s32 5, %v509
    %v511 = vrot.slane %v486, %v510
    %v512 = vlaneseq
    %v513 = vshrl.u32 %v512, 7
    %v514 = vsub.s32 6, %v513
    %v515 = vrot.slane %v486, %v514
    %v651 = vunpack.c.l.b16 %v358
    %v652 = vunpack.c.h.b16 %v358
    %v653 = vunpack.c.l.b16 %v359
    %v654 = vunpack.c.h.b16 %v359
    %v655 = vunpack.c.l.b16 %v360
    %v656 = vunpack.c.h.b16 %v360
    %v657 = vunpack.c.l.b16 %v361
    %v658 = vunpack.c.l.b16 %v362
    %v659 = vunpack.c.h.b16 %v362
    %v660 = vunpack.c.l.b16 %v363
    %v661 = vunpack.c.h.b16 %v363
    %v662 = vunpack.c.l.b16 %v364
    %v663 = vunpack.c.h.b16 %v364
    %v664 = vunpack.c.l.b16 %v365
    %v665 = vunpack.c.l.b16 %v366
    %v666 = vunpack.c.h.b16 %v366
    %v667 = vunpack.c.l.b16 %v367
    %v668 = vunpack.c.h.b16 %v367
    %v669 = vunpack.c.l.b16 %v368
    %v670 = vunpack.c.h.b16 %v368
    %v671 = vunpack.c.l.b16 %v369
    %v672 = vunpack.c.l.b16 %v370
    %v673 = vunpack.c.h.b16 %v370
    %v674 = vunpack.c.l.b16 %v371
    %v675 = vunpack.c.h.b16 %v371
    %v676 = vunpack.c.l.b16 %v372
    %v677 = vunpack.c.h.b16 %v372
    %v678 = vunpack.c.l.b16 %v373
    %v679 = vunpack.c.l.b16 %v374
    %v680 = vunpack.c.h.b16 %v374
    %v681 = vunpack.c.l.b16 %v375
    %v682 = vunpack.c.h.b16 %v375
    %v683 = vunpack.c.l.b16 %v376
    %v684 = vunpack.c.h.b16 %v376
    %v685 = vunpack.c.l.b16 %v377
    %v686 = vunpack.c.l.b16 %v378
    %v687 = vunpack.c.h.b16 %v378
    %v688 = vunpack.c.l.b16 %v379
    %v689 = vunpack.c.h.b16 %v379
    %v690 = vunpack.c.l.b16 %v380
    %v691 = vunpack.c.h.b16 %v380
    %v692 = vunpack.c.l.b16 %v381
    %v693 = vunpack.c.l.b16 %v382
    %v694 = vunpack.c.h.b16 %v382
    %v695 = vunpack.c.l.b16 %v383
    %v696 = vunpack.c.h.b16 %v383
    %v697 = vunpack.c.l.b16 %v384
    %v698 = vunpack.c.h.b16 %v384
    %v699 = vunpack.c.l.b16 %v385
    %v700 = vunpack.c.l.b16 %v386
    %v701 = vunpack.c.h.b16 %v386
    %v702 = vunpack.c.l.b16 %v387
    %v703 = vunpack.c.h.b16 %v387
    %v704 = vunpack.c.l.b16 %v388
    %v705 = vunpack.c.h.b16 %v388
    %v706 = vunpack.c.l.b16 %v389
    %v707 = vunpack.c.l.b16 %v390
    %v708 = vunpack.c.h.b16 %v390
    %v709 = vunpack.c.l.b16 %v391
    %v710 = vunpack.c.h.b16 %v391
    %v711 = vunpack.c.l.b16 %v392
    %v712 = vunpack.c.h.b16 %v392
    %v713 = vunpack.c.l.b16 %v393
    %v714 = vunpack.c.l.b16 %v394
    %v715 = vunpack.c.h.b16 %v394
    %v716 = vunpack.c.l.b16 %v395
    %v717 = vunpack.c.h.b16 %v395
    %v718 = vunpack.c.l.b16 %v396
    %v719 = vunpack.c.h.b16 %v396
    %v720 = vunpack.c.l.b16 %v397
    %v721 = vunpack.c.l.b16 %v398
    %v722 = vunpack.c.h.b16 %v398
    %v723 = vunpack.c.l.b16 %v399
    %v724 = vunpack.c.h.b16 %v399
    %v725 = vunpack.c.l.b16 %v400
    %v726 = vunpack.c.h.b16 %v400
    %v727 = vunpack.c.l.b16 %v401
    %v728 = vunpack.c.l.b16 %v402
    %v729 = vunpack.c.h.b16 %v402
    %v730 = vunpack.c.l.b16 %v403
    %v731 = vunpack.c.h.b16 %v403
    %v732 = vunpack.c.l.b16 %v404
    %v733 = vunpack.c.h.b16 %v404
    %v734 = vunpack.c.l.b16 %v405
    %v735 = vunpack.c.l.b16 %v406
    %v736 = vunpack.c.h.b16 %v406
    %v737 = vunpack.c.l.b16 %v407
    %v738 = vunpack.c.h.b16 %v407
    %v739 = vunpack.c.l.b16 %v408
    %v740 = vunpack.c.h.b16 %v408
    %v741 = vunpack.c.l.b16 %v409
    %v742 = vunpack.c.l.b16 %v410
    %v743 = vunpack.c.h.b16 %v410
    %v744 = vunpack.c.l.b16 %v411
    %v745 = vunpack.c.h.b16 %v411
    %v746 = vunpack.c.l.b16 %v412
    %v747 = vunpack.c.h.b16 %v412
    %v748 = vunpack.c.l.b16 %v413
    %v749 = vunpack.c.l.b16 %v414
    %v750 = vunpack.c.h.b16 %v414
    %v751 = vunpack.c.l.b16 %v415
    %v752 = vunpack.c.h.b16 %v415
    %v753 = vunpack.c.l.b16 %v416
    %v754 = vunpack.c.h.b16 %v416
    %v755 = vunpack.c.l.b16 %v417
    %v756 = vunpack.c.l.b16 %v418
    %v757 = vunpack.c.h.b16 %v418
    %v758 = vunpack.c.l.b16 %v419
    %v759 = vunpack.c.h.b16 %v419
    %v760 = vunpack.c.l.b16 %v420
    %v761 = vunpack.c.h.b16 %v420
    %v762 = vunpack.c.l.b16 %v421
    %v763 = vunpack.c.l.b16 %v422
    %v764 = vunpack.c.h.b16 %v422
    %v765 = vunpack.c.l.b16 %v423
    %v766 = vunpack.c.h.b16 %v423
    %v767 = vunpack.c.l.b16 %v424
    %v768 = vunpack.c.h.b16 %v424
    %v769 = vunpack.c.l.b16 %v425
    %v770 = vunpack.c.l.b16 %v426
    %v771 = vunpack.c.h.b16 %v426
    %v772 = vunpack.c.l.b16 %v427
    %v773 = vunpack.c.h.b16 %v427
    %v774 = vunpack.c.l.b16 %v428
    %v775 = vunpack.c.h.b16 %v428
    %v776 = vunpack.c.l.b16 %v429
    %v777 = vunpack.c.l.b16 %v430
    %v778 = vunpack.c.h.b16 %v430
    %v779 = vunpack.c.l.b16 %v431
    %v780 = vunpack.c.h.b16 %v431
    %v781 = vunpack.c.l.b16 %v432
    %v782 = vunpack.c.h.b16 %v432
    %v783 = vunpack.c.l.b16 %v433
    %v784 = vunpack.c.l.b16 %v434
    %v785 = vunpack.c.h.b16 %v434
    %v786 = vunpack.c.l.b16 %v435
    %v787 = vunpack.c.h.b16 %v435
    %v788 = vunpack.c.l.b16 %v436
    %v789 = vunpack.c.h.b16 %v436
    %v790 = vunpack.c.l.b16 %v437
    %v791 = vunpack.c.l.b16 %v438
    %v792 = vunpack.c.h.b16 %v438
    %v793 = vunpack.c.l.b16 %v439
    %v794 = vunpack.c.h.b16 %v439
    %v795 = vunpack.c.l.b16 %v440
    %v796 = vunpack.c.h.b16 %v440
    %v797 = vunpack.c.l.b16 %v441
    %v798 = vunpack.c.l.b16 %v442
    %v799 = vunpack.c.h.b16 %v442
    %v800 = vunpack.c.l.b16 %v443
    %v801 = vunpack.c.h.b16 %v443
    %v802 = vunpack.c.l.b16 %v444
    %v803 = vunpack.c.h.b16 %v444
    %v804 = vunpack.c.l.b16 %v445
    %v805 = vunpack.c.l.b16 %v446
    %v806 = vunpack.c.h.b16 %v446
    %v807 = vunpack.c.l.b16 %v447
    %v808 = vunpack.c.h.b16 %v447
    %v809 = vunpack.c.l.b16 %v448
    %v810 = vunpack.c.h.b16 %v448
    %v811 = vunpack.c.l.b16 %v449
    %v812 = vunpack.c.l.b16 %v450
    %v813 = vunpack.c.h.b16 %v450
    %v814 = vunpack.c.l.b16 %v451
    %v815 = vunpack.c.h.b16 %v451
    %v816 = vunpack.c.l.b16 %v452
    %v817 = vunpack.c.h.b16 %v452
    %v818 = vunpack.c.l.b16 %v453
    %v819 = vunpack.c.l.b16 %v454
    %v820 = vunpack.c.h.b16 %v454
    %v821 = vunpack.c.l.b16 %v455
    %v822 = vunpack.c.h.b16 %v455
    %v823 = vunpack.c.l.b16 %v456
    %v824 = vunpack.c.h.b16 %v456
    %v825 = vunpack.c.l.b16 %v457
    %v826 = vunpack.c.l.b16 %v458
    %v827 = vunpack.c.h.b16 %v458
    %v828 = vunpack.c.l.b16 %v459
    %v829 = vunpack.c.h.b16 %v459
    %v830 = vunpack.c.l.b16 %v460
    %v831 = vunpack.c.h.b16 %v460
    %v832 = vunpack.c.l.b16 %v461
    %v833 = vunpack.c.l.b16 %v462
    %v834 = vunpack.c.h.b16 %v462
    %v835 = vunpack.c.l.b16 %v463
    %v836 = vunpack.c.h.b16 %v463
    %v837 = vunpack.c.l.b16 %v464
    %v838 = vunpack.c.h.b16 %v464
    %v839 = vunpack.c.l.b16 %v465
    %v840 = vunpack.c.l.b16 %v466
    %v841 = vunpack.c.h.b16 %v466
    %v842 = vunpack.c.l.b16 %v467
    %v843 = vunpack.c.h.b16 %v467
    %v844 = vunpack.c.l.b16 %v468
    %v845 = vunpack.c.h.b16 %v468
    %v846 = vunpack.c.l.b16 %v469
    %v847 = vunpack.c.l.b16 %v470
    %v848 = vunpack.c.h.b16 %v470
    %v849 = vunpack.c.l.b16 %v471
    %v850 = vunpack.c.h.b16 %v471
    %v851 = vunpack.c.l.b16 %v472
    %v852 = vunpack.c.h.b16 %v472
    %v853 = vunpack.c.l.b16 %v473
    %v854 = vunpack.c.l.b16 %v474
    %v855 = vunpack.c.h.b16 %v474
    %v856 = vunpack.c.l.b16 %v475
    %v857 = vunpack.c.h.b16 %v475
    %v858 = vunpack.c.l.b16 %v476
    %v859 = vunpack.c.h.b16 %v476
    %v860 = vunpack.c.l.b16 %v477
    %v861 = vunpack.c.l.b16 %v478
    %v862 = vunpack.c.h.b16 %v478
    %v863 = vunpack.c.l.b16 %v479
    %v864 = vunpack.c.h.b16 %v479
    %v865 = vunpack.c.l.b16 %v480
    %v866 = vunpack.c.h.b16 %v480
    %v867 = vunpack.c.l.b16 %v481
    %v868 = vunpack.c.l.b16 %v482
    %v869 = vunpack.c.h.b16 %v482
    %v870 = vunpack.c.l.b16 %v483
    %v871 = vunpack.c.h.b16 %v483
    %v872 = vunpack.c.l.b16 %v484
    %v873 = vunpack.c.h.b16 %v484
    %v874 = vunpack.c.l.b16 %v485
    %v875 = vpack.c.b16 %v658, %v651
    %v876 = vpack.c.b16 %v659, %v652
    %v877 = vpack.c.b16 %v660, %v653
    %v878 = vpack.c.b16 %v661, %v654
    %v879 = vpack.c.b16 %v662, %v655
    %v880 = vpack.c.b16 %v663, %v656
    %v881 = vpack.c.b16 %v664, %v657
    %v882 = vpack.c.b16 %v672, %v665
    %v883 = vpack.c.b16 %v673, %v666
    %v884 = vpack.c.b16 %v674, %v667
    %v885 = vpack.c.b16 %v675, %v668
    %v886 = vpack.c.b16 %v676, %v669
    %v887 = vpack.c.b16 %v677, %v670
    %v888 = vpack.c.b16 %v678, %v671
    %v889 = vpack.c.b16 %v686, %v679
    %v890 = vpack.c.b16 %v687, %v680
    %v891 = vpack.c.b16 %v688, %v681
    %v892 = vpack.c.b16 %v689, %v682
    %v893 = vpack.c.b16 %v690, %v683
    %v894 = vpack.c.b16 %v691, %v684
    %v895 = vpack.c.b16 %v692, %v685
    %v896 = vpack.c.b16 %v700, %v693
    %v897 = vpack.c.b16 %v701, %v694
    %v898 = vpack.c.b16 %v702, %v695
    %v899 = vpack.c.b16 %v703, %v696
    %v900 = vpack.c.b16 %v704, %v697
    %v901 = vpack.c.b16 %v705, %v698
    %v902 = vpack.c.b16 %v706, %v699
    %v903 = vpack.c.b16 %v714, %v707
    %v904 = vpack.c.b16 %v715, %v708
    %v905 = vpack.c.b16 %v716, %v709
    %v906 = vpack.c.b16 %v717, %v710
    %v907 = vpack.c.b16 %v718, %v711
    %v908 = vpack.c.b16 %v719, %v712
    %v909 = vpack.c.b16 %v720, %v713
    %v910 = vpack.c.b16 %v728, %v721
    %v911 = vpack.c.b16 %v729, %v722
    %v912 = vpack.c.b16 %v730, %v723
    %v913 = vpack.c.b16 %v731, %v724
    %v914 = vpack.c.b16 %v732, %v725
    %v915 = vpack.c.b16 %v733, %v726
    %v916 = vpack.c.b16 %v734, %v727
    %v917 = vpack.c.b16 %v742, %v735
    %v918 = vpack.c.b16 %v743, %v736
    %v919 = vpack.c.b16 %v744, %v737
    %v920 = vpack.c.b16 %v745, %v738
    %v921 = vpack.c.b16 %v746, %v739
    %v922 = vpack.c.b16 %v747, %v740
    %v923 = vpack.c.b16 %v748, %v741
    %v924 = vpack.c.b16 %v756, %v749
    %v925 = vpack.c.b16 %v757, %v750
    %v926 = vpack.c.b16 %v758, %v751
    %v927 = vpack.c.b16 %v759, %v752
    %v928 = vpack.c.b16 %v760, %v753
    %v929 = vpack.c.b16 %v761, %v754
    %v930 = vpack.c.b16 %v762, %v755
    %v931 = vpack.c.b16 %v770, %v763
    %v932 = vpack.c.b16 %v771, %v764
    %v933 = vpack.c.b16 %v772, %v765
    %v934 = vpack.c.b16 %v773, %v766
    %v935 = vpack.c.b16 %v774, %v767
    %v936 = vpack.c.b16 %v775, %v768
    %v937 = vpack.c.b16 %v776, %v769
    %v938 = vpack.c.b16 %v784, %v777
    %v939 = vpack.c.b16 %v785, %v778
    %v940 = vpack.c.b16 %v786, %v779
    %v941 = vpack.c.b16 %v787, %v780
    %v942 = vpack.c.b16 %v788, %v781
    %v943 = vpack.c.b16 %v789, %v782
    %v944 = vpack.c.b16 %v790, %v783
    %v945 = vpack.c.b16 %v798, %v791
    %v946 = vpack.c.b16 %v799, %v792
    %v947 = vpack.c.b16 %v800, %v793
    %v948 = vpack.c.b16 %v801, %v794
    %v949 = vpack.c.b16 %v802, %v795
    %v950 = vpack.c.b16 %v803, %v796
    %v951 = vpack.c.b16 %v804, %v797
    %v952 = vpack.c.b16 %v812, %v805
    %v953 = vpack.c.b16 %v813, %v806
    %v954 = vpack.c.b16 %v814, %v807
    %v955 = vpack.c.b16 %v815, %v808
    %v956 = vpack.c.b16 %v816, %v809
    %v957 = vpack.c.b16 %v817, %v810
    %v958 = vpack.c.b16 %v818, %v811
    %v959 = vpack.c.b16 %v826, %v819
    %v960 = vpack.c.b16 %v827, %v820
    %v961 = vpack.c.b16 %v828, %v821
    %v962 = vpack.c.b16 %v829, %v822
    %v963 = vpack.c.b16 %v830, %v823
    %v964 = vpack.c.b16 %v831, %v824
    %v965 = vpack.c.b16 %v832, %v825
    %v966 = vpack.c.b16 %v840, %v833
    %v967 = vpack.c.b16 %v841, %v834
    %v968 = vpack.c.b16 %v842, %v835
    %v969 = vpack.c.b16 %v843, %v836
    %v970 = vpack.c.b16 %v844, %v837
    %v971 = vpack.c.b16 %v845, %v838
    %v972 = vpack.c.b16 %v846, %v839
    %v973 = vpack.c.b16 %v854, %v847
    %v974 = vpack.c.b16 %v855, %v848
    %v975 = vpack.c.b16 %v856, %v849
    %v976 = vpack.c.b16 %v857, %v850
    %v977 = vpack.c.b16 %v858, %v851
    %v978 = vpack.c.b16 %v859, %v852
    %v979 = vpack.c.b16 %v860, %v853
    %v980 = vpack.c.b16 %v868, %v861
    %v981 = vpack.c.b16 %v869, %v862
    %v982 = vpack.c.b16 %v870, %v863
    %v983 = vpack.c.b16 %v871, %v864
    %v984 = vpack.c.b16 %v872, %v865
    %v985 = vpack.c.b16 %v873, %v866
    %v986 = vpack.c.b16 %v874, %v867
    %1099 = vmatprep.subr.bf16.mxu0 %v876
    %1100 = vmatpush1.bf16.msra.mxu0 %v875
    %1101 = vmatprep.subr.bf16.mxu0 %v883
    %1102 = vmatpush1.bf16.msra.mxu0 %v882
    %1103 = vmatprep.subr.bf16.mxu0 %v890
    %1104 = vmatpush1.bf16.msra.mxu0 %v889
    %1105 = vmatprep.subr.bf16.mxu0 %v897
    %1106 = vmatpush1.bf16.msra.mxu0 %v896
    %1107 = vmatprep.subr.bf16.mxu0 %v904
    %1108 = vmatpush1.bf16.msra.mxu0 %v903
    %1109 = vmatprep.subr.bf16.mxu0 %v911
    %1110 = vmatpush1.bf16.msra.mxu0 %v910
    %1111 = vmatprep.subr.bf16.mxu0 %v918
    %1112 = vmatpush1.bf16.msra.mxu0 %v917
    %1113 = vmatprep.subr.bf16.mxu0 %v925
    %1114 = vmatpush1.bf16.msra.mxu0 %v924
    %1115 = vmatprep.subr.bf16.mxu0 %v932
    %1116 = vmatpush1.bf16.msra.mxu0 %v931
    %1117 = vmatprep.subr.bf16.mxu0 %v939
    %1118 = vmatpush1.bf16.msra.mxu0 %v938
    %1119 = vmatprep.subr.bf16.mxu0 %v946
    %1120 = vmatpush1.bf16.msra.mxu0 %v945
    %1121 = vmatprep.subr.bf16.mxu0 %v953
    %1122 = vmatpush1.bf16.msra.mxu0 %v952
    %1123 = vmatprep.subr.bf16.mxu0 %v960
    %1124 = vmatpush1.bf16.msra.mxu0 %v959
    %1125 = vmatprep.subr.bf16.mxu0 %v967
    %1126 = vmatpush1.bf16.msra.mxu0 %v966
    %1127 = vmatprep.subr.bf16.mxu0 %v974
    %1128 = vmatpush1.bf16.msra.mxu0 %v973
    %1129 = vmatprep.subr.bf16.mxu0 %v981
    %1130 = vmatpush1.bf16.msra.mxu0 %v980
    %1131 = vmatprep.mubr.bf16.mxu0 %v355
    %1132 = vmatmul.mubr.bf16.gmra.mrb[0].mxu0 %v354
    %v1133 = vpop.f32.mrb[0].mxu0
    %v1134 = vadd.f32 %v491, %v1133
    %v1135 = vpop.f32.mrb[0].mxu0
    %v1136 = vadd.f32 %v495, %v1135
    %v1137 = vpop.f32.mrb[0].mxu0
    %v1138 = vadd.f32 %v491, %v1137
    %v1139 = vpop.f32.mrb[0].mxu0
    %v1140 = vadd.f32 %v495, %v1139
    %1141 = vmatprep.mubr.bf16.mxu0 %v357
    %1142 = vmatmul.mubr.bf16.gmra.mrb[0].mxu0 %v356
    %v1143 = vpop.f32.mrb[0].mxu0
    %v1144 = vadd.f32 %v491, %v1143
    %v1145 = vpop.f32.mrb[0].mxu0
    %v1146 = vadd.f32 %v495, %v1145
    %v1147 = vpop.f32.mrb[0].mxu0
    %v1148 = vpop.f32.mrb[0].mxu0
    %1149 = vdwg.mxu0
    %1150 = vmatprep.subr.bf16.mxu0 %v878
    %1151 = vmatpush1.bf16.msra.mxu0 %v877
    %1152 = vmatprep.subr.bf16.mxu0 %v885
    %1153 = vmatpush1.bf16.msra.mxu0 %v884
    %1154 = vmatprep.subr.bf16.mxu0 %v892
    %1155 = vmatpush1.bf16.msra.mxu0 %v891
    %1156 = vmatprep.subr.bf16.mxu0 %v899
    %1157 = vmatpush1.bf16.msra.mxu0 %v898
    %1158 = vmatprep.subr.bf16.mxu0 %v906
    %1159 = vmatpush1.bf16.msra.mxu0 %v905
    %1160 = vmatprep.subr.bf16.mxu0 %v913
    %1161 = vmatpush1.bf16.msra.mxu0 %v912
    %1162 = vmatprep.subr.bf16.mxu0 %v920
    %1163 = vmatpush1.bf16.msra.mxu0 %v919
    %1164 = vmatprep.subr.bf16.mxu0 %v927
    %1165 = vmatpush1.bf16.msra.mxu0 %v926
    %1166 = vmatprep.subr.bf16.mxu0 %v934
    %1167 = vmatpush1.bf16.msra.mxu0 %v933
    %1168 = vmatprep.subr.bf16.mxu0 %v941
    %1169 = vmatpush1.bf16.msra.mxu0 %v940
    %1170 = vmatprep.subr.bf16.mxu0 %v948
    %1171 = vmatpush1.bf16.msra.mxu0 %v947
    %1172 = vmatprep.subr.bf16.mxu0 %v955
    %1173 = vmatpush1.bf16.msra.mxu0 %v954
    %1174 = vmatprep.subr.bf16.mxu0 %v962
    %1175 = vmatpush1.bf16.msra.mxu0 %v961
    %1176 = vmatprep.subr.bf16.mxu0 %v969
    %1177 = vmatpush1.bf16.msra.mxu0 %v968
    %1178 = vmatprep.subr.bf16.mxu0 %v976
    %1179 = vmatpush1.bf16.msra.mxu0 %v975
    %1180 = vmatprep.subr.bf16.mxu0 %v983
    %1181 = vmatpush1.bf16.msra.mxu0 %v982
    %1182 = vmatprep.mubr.bf16.mxu0 %v355
    %1183 = vmatmul.mubr.bf16.gmra.mrb[0].mxu0 %v354
    %v1184 = vpop.f32.mrb[0].mxu0
    %v1185 = vadd.f32 %v499, %v1184
    %v1186 = vpop.f32.mrb[0].mxu0
    %v1187 = vadd.f32 %v503, %v1186
    %v1188 = vpop.f32.mrb[0].mxu0
    %v1189 = vadd.f32 %v499, %v1188
    %v1190 = vpop.f32.mrb[0].mxu0
    %v1191 = vadd.f32 %v503, %v1190
    %1192 = vmatprep.mubr.bf16.mxu0 %v357
    %1193 = vmatmul.mubr.bf16.gmra.mrb[0].mxu0 %v356
    %v1194 = vpop.f32.mrb[0].mxu0
    %v1195 = vadd.f32 %v499, %v1194
    %v1196 = vpop.f32.mrb[0].mxu0
    %v1197 = vadd.f32 %v503, %v1196
    %v1198 = vpop.f32.mrb[0].mxu0
    %v1199 = vpop.f32.mrb[0].mxu0
    %1200 = vdwg.mxu0
    %1201 = vmatprep.subr.bf16.mxu0 %v880
    %1202 = vmatpush1.bf16.msra.mxu0 %v879
    %1203 = vmatprep.subr.bf16.mxu0 %v887
    %1204 = vmatpush1.bf16.msra.mxu0 %v886
    %1205 = vmatprep.subr.bf16.mxu0 %v894
    %1206 = vmatpush1.bf16.msra.mxu0 %v893
    %1207 = vmatprep.subr.bf16.mxu0 %v901
    %1208 = vmatpush1.bf16.msra.mxu0 %v900
    %1209 = vmatprep.subr.bf16.mxu0 %v908
    %1210 = vmatpush1.bf16.msra.mxu0 %v907
    %1211 = vmatprep.subr.bf16.mxu0 %v915
    %1212 = vmatpush1.bf16.msra.mxu0 %v914
    %1213 = vmatprep.subr.bf16.mxu0 %v922
    %1214 = vmatpush1.bf16.msra.mxu0 %v921
    %1215 = vmatprep.subr.bf16.mxu0 %v929
    %1216 = vmatpush1.bf16.msra.mxu0 %v928
    %1217 = vmatprep.subr.bf16.mxu0 %v936
    %1218 = vmatpush1.bf16.msra.mxu0 %v935
    %1219 = vmatprep.subr.bf16.mxu0 %v943
    %1220 = vmatpush1.bf16.msra.mxu0 %v942
    %1221 = vmatprep.subr.bf16.mxu0 %v950
    %1222 = vmatpush1.bf16.msra.mxu0 %v949
    %1223 = vmatprep.subr.bf16.mxu0 %v957
    %1224 = vmatpush1.bf16.msra.mxu0 %v956
    %1225 = vmatprep.subr.bf16.mxu0 %v964
    %1226 = vmatpush1.bf16.msra.mxu0 %v963
    %1227 = vmatprep.subr.bf16.mxu0 %v971
    %1228 = vmatpush1.bf16.msra.mxu0 %v970
    %1229 = vmatprep.subr.bf16.mxu0 %v978
    %1230 = vmatpush1.bf16.msra.mxu0 %v977
    %1231 = vmatprep.subr.bf16.mxu0 %v985
    %1232 = vmatpush1.bf16.msra.mxu0 %v984
    %1233 = vmatprep.mubr.bf16.mxu0 %v355
    %1234 = vmatmul.mubr.bf16.gmra.mrb[0].mxu0 %v354
    %v1235 = vpop.f32.mrb[0].mxu0
    %v1236 = vadd.f32 %v507, %v1235
    %v1237 = vpop.f32.mrb[0].mxu0
    %v1238 = vadd.f32 %v511, %v1237
    %v1239 = vpop.f32.mrb[0].mxu0
    %v1240 = vadd.f32 %v507, %v1239
    %v1241 = vpop.f32.mrb[0].mxu0
    %v1242 = vadd.f32 %v511, %v1241
    %1243 = vmatprep.mubr.bf16.mxu0 %v357
    %1244 = vmatmul.mubr.bf16.gmra.mrb[0].mxu0 %v356
    %v1245 = vpop.f32.mrb[0].mxu0
    %v1246 = vadd.f32 %v507, %v1245
    %v1247 = vpop.f32.mrb[0].mxu0
    %v1248 = vadd.f32 %v511, %v1247
    %v1249 = vpop.f32.mrb[0].mxu0
    %v1250 = vpop.f32.mrb[0].mxu0
    %1251 = vdwg.mxu0
    %1252 = vmatprep.subr.bf16.mxu0 0
    %1253 = vmatpush1.bf16.msra.mxu0 %v881
    %1254 = vmatprep.subr.bf16.mxu0 0
    %1255 = vmatpush1.bf16.msra.mxu0 %v888
    %1256 = vmatprep.subr.bf16.mxu0 0
    %1257 = vmatpush1.bf16.msra.mxu0 %v895
    %1258 = vmatprep.subr.bf16.mxu0 0
    %1259 = vmatpush1.bf16.msra.mxu0 %v902
    %1260 = vmatprep.subr.bf16.mxu0 0
    %1261 = vmatpush1.bf16.msra.mxu0 %v909
    %1262 = vmatprep.subr.bf16.mxu0 0
    %1263 = vmatpush1.bf16.msra.mxu0 %v916
    %1264 = vmatprep.subr.bf16.mxu0 0
    %1265 = vmatpush1.bf16.msra.mxu0 %v923
    %1266 = vmatprep.subr.bf16.mxu0 0
    %1267 = vmatpush1.bf16.msra.mxu0 %v930
    %1268 = vmatprep.subr.bf16.mxu0 0
    %1269 = vmatpush1.bf16.msra.mxu0 %v937
    %1270 = vmatprep.subr.bf16.mxu0 0
    %1271 = vmatpush1.bf16.msra.mxu0 %v944
    %1272 = vmatprep.subr.bf16.mxu0 0
    %1273 = vmatpush1.bf16.msra.mxu0 %v951
    %1274 = vmatprep.subr.bf16.mxu0 0
    %1275 = vmatpush1.bf16.msra.mxu0 %v958
    %1276 = vmatprep.subr.bf16.mxu0 0
    %1277 = vmatpush1.bf16.msra.mxu0 %v965
    %1278 = vmatprep.subr.bf16.mxu0 0
    %1279 = vmatpush1.bf16.msra.mxu0 %v972
    %1280 = vmatprep.subr.bf16.mxu0 0
    %1281 = vmatpush1.bf16.msra.mxu0 %v979
    %1282 = vmatprep.subr.bf16.mxu0 0
    %1283 = vmatpush1.bf16.msra.mxu0 %v986
    %1284 = vmatprep.mubr.bf16.mxu0 %v355
    %1285 = vmatmul.mubr.bf16.gmra.mrb[0].mxu0 %v354
    %v1286 = vpop.f32.mrb[0].mxu0
    %v1287 = vadd.f32 %v515, %v1286
    %v1288 = vpop.f32.mrb[0].mxu0
    %v1289 = vpop.f32.mrb[0].mxu0
    %v1290 = vadd.f32 %v515, %v1289
    %v1291 = vpop.f32.mrb[0].mxu0
    %1292 = vmatprep.mubr.bf16.mxu0 %v357
    %1293 = vmatmul.mubr.bf16.gmra.mrb[0].mxu0 %v356
    %v1294 = vpop.f32.mrb[0].mxu0
    %v1295 = vadd.f32 %v515, %v1294
    %v1296 = vpop.f32.mrb[0].mxu0
    %v1297 = vpop.f32.mrb[0].mxu0
    %v1298 = vpop.f32.mrb[0].mxu0
    %1299 = vdwg.mxu0
    %1300 = vst [vmem:[#allocation12] sm:$0xff] %v1134
    %1301 = vst [vmem:[#allocation12 + $0x8] sm:$0xff] %v1136
    %1302 = vst [vmem:[#allocation12 + $0x10] sm:$0xff] %v1185
    %1303 = vst [vmem:[#allocation12 + $0x18] sm:$0xff] %v1187
    %1304 = vst [vmem:[#allocation12 + $0x20] sm:$0xff] %v1236
    %1305 = vst [vmem:[#allocation12 + $0x28] sm:$0xff] %v1238
    %1306 = vst [vmem:[#allocation12 + $0x30] sm:$0xff] %v1287
    %1307 = vst [vmem:[#allocation12 + $0x38] sm:$0xff] %v1138
    %1308 = vst [vmem:[#allocation12 + $0x40] sm:$0xff] %v1140
    %1309 = vst [vmem:[#allocation12 + $0x48] sm:$0xff] %v1189
    %1310 = vst [vmem:[#allocation12 + $0x50] sm:$0xff] %v1191
    %1311 = vst [vmem:[#allocation12 + $0x58] sm:$0xff] %v1240
    %1312 = vst [vmem:[#allocation12 + $0x60] sm:$0xff] %v1242
    %1313 = vst [vmem:[#allocation12 + $0x68] sm:$0xff] %v1290
    %1314 = vst [vmem:[#allocation12 + $0x70] sm:$0xff] %v1144
    %1315 = vst [vmem:[#allocation12 + $0x78] sm:$0xff] %v1146
    %1316 = vst [vmem:[#allocation12 + $0x80] sm:$0xff] %v1195
    %1317 = vst [vmem:[#allocation12 + $0x88] sm:$0xff] %v1197
    %1318 = vst [vmem:[#allocation12 + $0x90] sm:$0xff] %v1246
    %1319 = vst [vmem:[#allocation12 + $0x98] sm:$0xff] %v1248
    %1320 = vst [vmem:[#allocation12 + $0xa0] sm:$0xff] %v1295
    // Predicated region
    $region46: #{tpu_custom_call.1} parent=1 // pred_check
      _
    $region47: #{tpu_custom_call.1} parent=1 // pred_check_branch
      %1322 = sbr.rel (0) target = $region49
    $region48: #{tpu_custom_call.1} parent=1 // pred_region
      %s1324 = ssub.s32 2688, 2688
      %1325 = vsyncadd [#allocation6], %s1324
      %s1326 = sshll.u32 [#allocation12], 4
      %s1327 = int_to_ptr.vmem [resolvable:$true] %s1326
      %1332 = dma.vmem_to_hbm [thread:$0]  %s1327, 2688, %s7, [#allocation6], 896, 896, 56
    $region49: #{tpu_custom_call.1} parent=1 // pred_fallthru
      _
    // Predicated region
    $region50: #{tpu_custom_call.1} parent=1 // pred_check
      _
    $region51: #{tpu_custom_call.1} parent=1 // pred_check_branch
      %1334 = sbr.rel (0) target = $region53
    $region52: #{tpu_custom_call.1} parent=1 // pred_region
      %1335 = dma.done [#allocation6], 2688
    $region53: #{tpu_custom_call.1} parent=1 // pred_fallthru
      _
    %1336 = vsyncpa [#allocation5], 1
    %1337 = vsyncpa [#allocation8], 1
    %1338 = vsyncpa [#allocation11], 1
    %1339 = vsyncpa [#allocation6], 1

</llo_original>
